<compile_context>
chip_gen: v6e
topology: v6e:2x2x1
jax: 0.10.0
libtpu: 0.0.40
codegen_flags: <defaults>
</compile_context>

<pallas_src>
import math
import functools

import jax
import jax.numpy as jnp
from jax import lax
from jax.experimental import pallas as pl
from jax.experimental.pallas import tpu as pltpu


# ----------------------------------------------------------------------------
# Small helpers
# ----------------------------------------------------------------------------
def _round_up(x, m):
    return (x + m - 1) // m * m


def _choose_tile(dim, target, align):
    """Return (tile, padded_dim).

    Full-dim block if dim <= target (always layout-legal), else the largest
    `align`-aligned divisor of dim that is <= target, else pad dim up to a
    multiple of `target`.
    """
    if dim <= target:
        return dim, dim
    t = (target // align) * align
    while t >= align:
        if dim % t == 0:
            return t, dim
        t -= align
    return target, _round_up(dim, target)


def _pad_axis(a, axis, new_size, value=0.0):
    if a.shape[axis] == new_size:
        return a
    pads = [(0, 0)] * a.ndim
    pads[axis] = (0, new_size - a.shape[axis])
    return jnp.pad(a, pads, constant_values=value)


def _vmem_limit(in_block_bytes, out_block_bytes, scratch_bytes):
    # double-buffered input/output blocks + scratch, 2x safety margin for
    # internal layout padding, floored at 16 MiB (<= every generation's
    # scoped default, so we never over-reserve v7x's 64 MiB VMEM).
    est = 2 * (in_block_bytes + out_block_bytes) + scratch_bytes
    return int(min(max(2 * est + (4 << 20), 16 << 20), 96 << 20))


# ----------------------------------------------------------------------------
# Fused linear (+bias): tiled, pipelined, f32 accumulation on the MXU
# ----------------------------------------------------------------------------
def _linear_kernel(x_ref, w_ref, b_ref, o_ref, acc_ref):
    k_idx = pl.program_id(2)

    @pl.when(k_idx == 0)
    def _init():
        acc_ref[...] = jnp.zeros_like(acc_ref)

    acc_ref[...] += jnp.dot(x_ref[...], w_ref[...],
                            preferred_element_type=jnp.float32)

    @pl.when(k_idx == pl.num_programs(2) - 1)
    def _finalize():
        o_ref[...] = (acc_ref[...] + b_ref[...]).astype(o_ref.dtype)


def pallas_linear(x, w, b, *, out_dtype=None, tm=256, tn=512, tk=512):
    """x: [M, K] bf16, w: [K, N] bf16, b: [N] f32  ->  [M, N]."""
    M, K = x.shape
    Kw, N = w.shape
    assert K == Kw, (K, Kw)
    out_dtype = out_dtype if out_dtype is not None else x.dtype

    tm, Mp = _choose_tile(M, tm, 8)
    tn, Np = _choose_tile(N, tn, 128)
    tk, Kp = _choose_tile(K, tk, 128)

    xp = _pad_axis(_pad_axis(x, 0, Mp), 1, Kp)
    wp = _pad_axis(_pad_axis(w, 0, Kp), 1, Np)
    bp = _pad_axis(b.astype(jnp.float32), 0, Np).reshape(1, Np)

    grid = (Mp // tm, Np // tn, Kp // tk)
    in_bytes = (tm * tk + tk * tn) * 2 + tn * 4
    out_bytes = tm * tn * jnp.dtype(out_dtype).itemsize
    scr_bytes = tm * tn * 4

    out = pl.pallas_call(
        _linear_kernel,
        out_shape=jax.ShapeDtypeStruct((Mp, Np), out_dtype),
        grid_spec=pltpu.PrefetchScalarGridSpec(
            num_scalar_prefetch=0,
            grid=grid,
            in_specs=[
                pl.BlockSpec((tm, tk), lambda i, j, k: (i, k)),
                pl.BlockSpec((tk, tn), lambda i, j, k: (k, j)),
                pl.BlockSpec((1, tn), lambda i, j, k: (0, j)),
            ],
            out_specs=pl.BlockSpec((tm, tn), lambda i, j, k: (i, j)),
            scratch_shapes=[pltpu.VMEM((tm, tn), jnp.float32)],
        ),
        compiler_params=pltpu.CompilerParams(
            dimension_semantics=("parallel", "parallel", "arbitrary"),
            vmem_limit_bytes=_vmem_limit(in_bytes, out_bytes, scr_bytes)),
        cost_estimate=pl.CostEstimate(
            flops=2 * Mp * Np * Kp,
            transcendentals=0,
            bytes_accessed=(Mp * Kp + Kp * Np) * 2
            + Mp * Np * jnp.dtype(out_dtype).itemsize + Np * 4),
    )(xp, wp, bp)
    if (Mp, Np) != (M, N):
        out = out[:M, :N]
    return out


# ----------------------------------------------------------------------------
# Flash-style multi-head attention over a per-head [*, B, H, L, dh] layout
# ----------------------------------------------------------------------------
def _mha_kernel(q_ref, k_ref, v_ref, bias_ref, o_ref, m_ref, l_ref, acc_ref,
                *, causal, scale, lk, lk_pad, tq, tkv):
    qi = pl.program_id(2)
    ki = pl.program_id(3)

    @pl.when(ki == 0)
    def _init():
        m_ref[...] = jnp.full(m_ref.shape, -jnp.inf, jnp.float32)
        l_ref[...] = jnp.zeros_like(l_ref)
        acc_ref[...] = jnp.zeros_like(acc_ref)

    def _process():
        q = q_ref[0, 0, 0, :, :] * scale          # scale folded into q (tq, dh)
        k = k_ref[0, 0, 0, :, :]                  # (tkv, dh)
        v = v_ref[0, 0, 0, :, :]                  # (tkv, dh)

        # scores: contract last axes directly (no transpose), f32 on the MXU
        s = lax.dot_general(q, k, (((1,), (1,)), ((), ())),
                            preferred_element_type=jnp.float32)   # (tq, tkv)

        if bias_ref is not None:
            s = s + bias_ref[0, :, :].astype(jnp.float32)          # (1|tq, tkv)

        need_valid = lk_pad != lk
        if causal or need_valid:
            q_pos = qi * tq + lax.broadcasted_iota(jnp.int32, (tq, tkv), 0)
            k_pos = ki * tkv + lax.broadcasted_iota(jnp.int32, (tq, tkv), 1)
            if causal and need_valid:
                ok = (k_pos <= q_pos) & (k_pos < lk)
            elif causal:
                ok = k_pos <= q_pos
            else:
                ok = k_pos < lk
            s = jnp.where(ok, s, -1e9)

        m_prev = m_ref[...]                                        # (tq, 1)
        m_new = jnp.maximum(m_prev, jnp.max(s, axis=-1, keepdims=True))
        alpha = jnp.exp(m_prev - m_new)
        p = jnp.exp(s - m_new)                                     # f32
        l_ref[...] = alpha * l_ref[...] + jnp.sum(p, axis=-1, keepdims=True)
        pv = lax.dot_general(p.astype(v.dtype), v, (((1,), (0,)), ((), ())),
                             preferred_element_type=jnp.float32)   # (tq, dh)
        acc_ref[...] = alpha * acc_ref[...] + pv
        m_ref[...] = m_new

    if causal:
        # skip KV blocks fully above the diagonal (~2x on causal attention)
        pl.when(ki * tkv < (qi + 1) * tq)(_process)
    else:
        _process()

    @pl.when(ki == pl.num_programs(3) - 1)
    def _finalize():
        inv_l = pl.reciprocal(l_ref[...], approx=True)
        o_ref[0, 0, :, :] = (acc_ref[...] * inv_l).astype(o_ref.dtype)


def _mha_kernel_nobias(q_ref, k_ref, v_ref, o_ref, m_ref, l_ref, acc_ref, **kw):
    _mha_kernel(q_ref, k_ref, v_ref, None, o_ref, m_ref, l_ref, acc_ref, **kw)


def pallas_mha(q_arr, k_arr, v_arr, q_lead, k_lead, v_lead, bias, *,
               causal=False, scale=1.0, tq=256, tkv=512):
    """q_arr: [Gq, B, H, Lq, dh]; k_arr/v_arr: [Gk, B, H, Lk, dh] (bf16); the
    three may be the same buffer (q/k/v selected via the leading index).
    bias: None or additive bf16 [B, 1|Lq, Lk].  Returns [B, H, Lq, dh]."""
    _, B, H, Lq, dh = q_arr.shape
    Lk = k_arr.shape[3]

    tq, Lq_pad = _choose_tile(Lq, tq, 8)
    tkv, Lk_pad = _choose_tile(Lk, tkv, 128)

    q_p = _pad_axis(q_arr, 3, Lq_pad)
    if (k_arr is q_arr) and (Lk_pad == Lq_pad):
        k_p = q_p
    else:
        k_p = _pad_axis(k_arr, 3, Lk_pad)
    v_p = k_p if (v_arr is k_arr) else _pad_axis(v_arr, 3, Lk_pad)

    grid = (B, H, Lq_pad // tq, Lk_pad // tkv)
    in_specs = [
        pl.BlockSpec((1, 1, 1, tq, dh), lambda b, h, qi, ki: (q_lead, b, h, qi, 0)),
        pl.BlockSpec((1, 1, 1, tkv, dh), lambda b, h, qi, ki: (k_lead, b, h, ki, 0)),
        pl.BlockSpec((1, 1, 1, tkv, dh), lambda b, h, qi, ki: (v_lead, b, h, ki, 0)),
    ]
    args = [q_p, k_p, v_p]
    in_bytes = (tq * dh + 2 * tkv * dh) * 2

    statics = dict(causal=causal, scale=scale, lk=Lk, lk_pad=Lk_pad, tq=tq, tkv=tkv)
    if bias is not None:
        rq = bias.shape[1]
        bias_p = _pad_axis(bias, 2, Lk_pad)
        if rq == 1:
            bspec = pl.BlockSpec((1, 1, tkv), lambda b, h, qi, ki: (b, 0, ki))
            in_bytes += tkv * bias_p.dtype.itemsize
        else:
            bias_p = _pad_axis(bias_p, 1, Lq_pad)
            bspec = pl.BlockSpec((1, tq, tkv), lambda b, h, qi, ki: (b, qi, ki))
            in_bytes += tq * tkv * bias_p.dtype.itemsize
        in_specs.append(bspec)
        args.append(bias_p)
        kernel = functools.partial(_mha_kernel, **statics)
    else:
        kernel = functools.partial(_mha_kernel_nobias, **statics)

    out_bytes = tq * dh * 2
    scr_bytes = tq * (dh + 2) * 4

    out = pl.pallas_call(
        kernel,
        out_shape=jax.ShapeDtypeStruct((B, H, Lq_pad, dh), q_arr.dtype),
        grid_spec=pltpu.PrefetchScalarGridSpec(
            num_scalar_prefetch=0,
            grid=grid,
            in_specs=in_specs,
            out_specs=pl.BlockSpec((1, 1, tq, dh),
                                   lambda b, h, qi, ki: (b, h, qi, 0)),
            scratch_shapes=[
                pltpu.VMEM((tq, 1), jnp.float32),    # running row max m
                pltpu.VMEM((tq, 1), jnp.float32),    # running denom  l
                pltpu.VMEM((tq, dh), jnp.float32),   # output accumulator
            ],
        ),
        compiler_params=pltpu.CompilerParams(
            dimension_semantics=("parallel", "parallel", "parallel", "arbitrary"),
            vmem_limit_bytes=_vmem_limit(in_bytes, out_bytes, scr_bytes)),
        cost_estimate=pl.CostEstimate(
            flops=4 * B * H * Lq_pad * Lk_pad * dh,
            transcendentals=B * H * Lq_pad * Lk_pad,
            bytes_accessed=2 * B * H * (Lq_pad + 2 * Lk_pad + Lq_pad) * dh),
    )(*args)
    if Lq_pad != Lq:
        out = out[:, :, :Lq, :]
    return out


# ----------------------------------------------------------------------------
# MultiHeadedAttention forward (module semantics; eval mode)
# ----------------------------------------------------------------------------
def init_mha_params(key, h, d_model):
    assert d_model % h == 0
    ks = jax.random.split(key, 8)
    bound = 1.0 / math.sqrt(d_model)

    def lin(kw, kb):
        w = jax.random.uniform(kw, (d_model, d_model), jnp.float32, -bound, bound)
        b = jax.random.uniform(kb, (d_model,), jnp.float32, -bound, bound)
        return w, b

    wq, bq = lin(ks[0], ks[1])
    wk, bk = lin(ks[2], ks[3])
    wv, bv = lin(ks[4], ks[5])
    wo, bo = lin(ks[6], ks[7])
    return {
        # Fused Q/K/V projection weight [D, 3D]; weights stored bf16 for the MXU.
        "w_qkv": jnp.concatenate([wq, wk, wv], axis=1).astype(jnp.bfloat16),
        "b_qkv": jnp.concatenate([bq, bk, bv], axis=0),
        "w_o": wo.astype(jnp.bfloat16),
        "b_o": bo,
    }


def multi_headed_attention(params, query, key, value, mask, n_heads, *,
                           causal=False):
    """Forward pass of MultiHeadedAttention (dropout = identity in eval).

    If causal=True the mask tensor is ignored and a causal mask is generated
    in-kernel (with fully-masked KV blocks skipped)."""
    B, Lq, D = query.shape
    Lk = key.shape[1]
    H = n_heads
    assert D % H == 0
    dh = D // H
    scale = 1.0 / math.sqrt(dh)
    bf16 = jnp.bfloat16

    # --- projections (fused where possible) ---------------------------------
    # NOTE: object-identity dispatch; semantically-equal but distinct arrays
    # fall back to the (correct) separate-projection path.
    if (query is key) and (key is value):
        qkv = pallas_linear(query.astype(bf16).reshape(B * Lq, D),
                            params["w_qkv"], params["b_qkv"], out_dtype=bf16)
        # [B*L, 3D] -> [3, B, H, L, dh]: one XLA copy; q/k/v are then selected
        # inside pallas_mha by leading-axis block indices (no slice copies).
        qkv_h = qkv.reshape(B, Lq, 3, H, dh).transpose(2, 0, 3, 1, 4)
        q_arr = k_arr = v_arr = qkv_h
        leads = (0, 1, 2)
    else:
        q = pallas_linear(query.astype(bf16).reshape(B * Lq, D),
                          params["w_qkv"][:, :D], params["b_qkv"][:D],
                          out_dtype=bf16)
        q_arr = q.reshape(B, Lq, H, dh).transpose(0, 2, 1, 3)[None]
        if key is value:
            kv = pallas_linear(key.astype(bf16).reshape(B * Lk, D),
                               params["w_qkv"][:, D:], params["b_qkv"][D:],
                               out_dtype=bf16)
            kv_h = kv.reshape(B, Lk, 2, H, dh).transpose(2, 0, 3, 1, 4)
            k_arr = v_arr = kv_h
            leads = (0, 0, 1)
        else:
            k = pallas_linear(key.astype(bf16).reshape(B * Lk, D),
                              params["w_qkv"][:, D:2 * D],
                              params["b_qkv"][D:2 * D], out_dtype=bf16)
            v = pallas_linear(value.astype(bf16).reshape(B * Lk, D),
                              params["w_qkv"][:, 2 * D:],
                              params["b_qkv"][2 * D:], out_dtype=bf16)
            k_arr = k.reshape(B, Lk, H, dh).transpose(0, 2, 1, 3)[None]
            v_arr = v.reshape(B, Lk, H, dh).transpose(0, 2, 1, 3)[None]
            leads = (0, 0, 0)

    # --- compact additive mask bias (bf16, q-dim kept size-1 for padding masks)
    if causal or mask is None:
        bias = None
    else:
        m = jnp.asarray(mask)
        if m.ndim == 2:
            m = m[None]
        rq = 1 if m.shape[-2] == 1 else Lq
        m = jnp.broadcast_to(m, (B, rq, Lk))
        bias = jnp.where(m == 0, jnp.float32(-1e9), jnp.float32(0.0)).astype(bf16)

    # TODO(synk): attention-probability dropout and the cached self.attn matrix
    # are not materialized (eval-mode identity / online softmax never forms them).
    o = pallas_mha(q_arr, k_arr, v_arr, leads[0], leads[1], leads[2], bias,
                   causal=causal, scale=scale)             # [B, H, Lq, dh] bf16
    o = o.transpose(0, 2, 1, 3).reshape(B * Lq, D)
    out = pallas_linear(o, params["w_o"], params["b_o"], out_dtype=jnp.float32)
    return out.reshape(B, Lq, D)


# ----------------------------------------------------------------------------
# Pure-JAX reference (f32) for correctness checks
# ----------------------------------------------------------------------------
def mha_reference(params, query, key, value, mask, n_heads):
    B, Lq, D = query.shape
    Lk = key.shape[1]
    dh = D // n_heads
    w = params["w_qkv"].astype(jnp.float32)
    b = params["b_qkv"]

    def proj(x, lo, hi):
        return x.reshape(-1, D) @ w[:, lo:hi] + b[lo:hi]

    q = proj(query, 0, D).reshape(B, Lq, n_heads, dh).transpose(0, 2, 1, 3)
    k = proj(key, D, 2 * D).reshape(B, Lk, n_heads, dh).transpose(0, 2, 1, 3)
    v = proj(value, 2 * D, 3 * D).reshape(B, Lk, n_heads, dh).transpose(0, 2, 1, 3)
    s = jnp.einsum("bhqd,bhkd->bhqk", q, k) / math.sqrt(dh)
    if mask is not None:
        m4 = jnp.broadcast_to(mask, (B, Lq, Lk))[:, None, :, :]
        s = jnp.where(m4 == 0, -1e9, s)
    p = jax.nn.softmax(s, axis=-1)
    o = jnp.einsum("bhqk,bhkd->bhqd", p, v).transpose(0, 2, 1, 3).reshape(B * Lq, D)
    out = o @ params["w_o"].astype(jnp.float32) + params["b_o"]
    return out.reshape(B, Lq, D)


# ----------------------------------------------------------------------------
if __name__ == "__main__":
    B, L = 2, 8
    D_MODEL, H = 32, 4

    root = jax.random.PRNGKey(0)
    kp, kx, km = jax.random.split(root, 3)
    params = init_mha_params(kp, H, D_MODEL)

    x = jax.random.normal(kx, (B, L, D_MODEL), jnp.float32)
    mask = jnp.broadcast_to(jnp.tril(jnp.ones((L, L), jnp.float32)), (B, L, L))
    ref = mha_reference(params, x, x, x, mask, H)

    # 1) general tensor-mask path (module semantics, compact bf16 bias)
    out_m = jax.block_until_ready(multi_headed_attention(params, x, x, x, mask, H))
    assert out_m.shape == (B, L, D_MODEL)
    assert bool(jnp.all(jnp.isfinite(out_m)))
    err = float(jnp.max(jnp.abs(out_m - ref)))
    assert err < 5e-2, f"tensor-mask path max abs diff {err}"

    # 2) in-kernel causal mask + block skipping (no mask tensor at all)
    out_c = jax.block_until_ready(
        multi_headed_attention(params, x, x, x, None, H, causal=True))
    err = float(jnp.max(jnp.abs(out_c - ref)))
    assert err < 5e-2, f"causal path max abs diff {err}"

    # 3) cross-attention with a padding-style [B, 1, Lk] mask
    Lm = 16
    memory = jax.random.normal(km, (B, Lm, D_MODEL), jnp.float32)
    src_mask = jnp.ones((B, 1, Lm), jnp.float32)
    out_x = jax.block_until_ready(
        multi_headed_attention(params, x, memory, memory, src_mask, H))
    ref_x = mha_reference(params, x, memory, memory, src_mask, H)
    assert out_x.shape == (B, L, D_MODEL)
    err = float(jnp.max(jnp.abs(out_x - ref_x)))
    assert err < 5e-2, f"cross-attention max abs diff {err}"

    print("KERNEL_OK")
</pallas_src>

<mosaic_0001>
module attributes {stable_mosaic.version = 11 : i64} {
  func.func @_linear_kernel(%arg0: i32, %arg1: i32, %arg2: i32, %arg3: memref<16x32xbf16, #tpu.memory_space<vmem>>, %arg4: memref<32x96xbf16, #tpu.memory_space<vmem>>, %arg5: memref<1x96xf32, #tpu.memory_space<vmem>>, %arg6: memref<16x96xbf16, #tpu.memory_space<vmem>>, %arg7: memref<16x96xf32, #tpu.memory_space<vmem>>) attributes {dimension_semantics = [#tpu.dimension_semantics<parallel>, #tpu.dimension_semantics<parallel>, #tpu.dimension_semantics<arbitrary>], iteration_bounds = array<i64: 1, 1, 1>, scalar_prefetch = 0 : i64, scratch_operands = 1 : i64, tpu.core_type = #tpu.core_type<tc>, window_params = [{transform_indices = @transform_0, window_bounds = array<i64: 16, 32>}, {transform_indices = @transform_1, window_bounds = array<i64: 32, 96>}, {transform_indices = @transform_2, window_bounds = array<i64: 1, 96>}, {transform_indices = @transform_3, window_bounds = array<i64: 16, 96>}]} {
    %c0_i32 = arith.constant 0 : i32
    %0 = arith.cmpi eq, %arg2, %c0_i32 : i32
    %1 = arith.extui %0 : i1 to i32
    %c0_i32_0 = arith.constant 0 : i32
    %2 = arith.cmpi ne, %1, %c0_i32_0 : i32
    scf.if %2 {
      %cst_10 = arith.constant 0.000000e+00 : f32
      %12 = vector.broadcast %cst_10 : f32 to vector<16x96xf32>
      %c0_11 = arith.constant 0 : index
      %c0_12 = arith.constant 0 : index
      %13 = vector.load %arg7[%c0_11, %c0_12] : memref<16x96xf32, #tpu.memory_space<vmem>>, vector<16x96xf32>
      tpu.vector_store %arg7[%c0_11, %c0_12], %12 {strides = array<i32>} : memref<16x96xf32, #tpu.memory_space<vmem>>, vector<16x96xf32>,
    } else {
    }
    %c0 = arith.constant 0 : index
    %c0_1 = arith.constant 0 : index
    %3 = vector.load %arg7[%c0, %c0_1] : memref<16x96xf32, #tpu.memory_space<vmem>>, vector<16x96xf32>
    %c0_2 = arith.constant 0 : index
    %c0_3 = arith.constant 0 : index
    %4 = vector.load %arg3[%c0_2, %c0_3] : memref<16x32xbf16, #tpu.memory_space<vmem>>, vector<16x32xbf16>
    %c0_4 = arith.constant 0 : index
    %c0_5 = arith.constant 0 : index
    %5 = vector.load %arg4[%c0_4, %c0_5] : memref<32x96xbf16, #tpu.memory_space<vmem>>, vector<32x96xbf16>
    %cst = arith.constant dense<0.000000e+00> : vector<16x96xf32>
    %6 = tpu.matmul %4, %5, %cst {dimension_numbers = #tpu.dot_dimension_numbers<[1], [0], [0], [1], [0, 0, 1, 1], [], []>} : vector<16x32xbf16>, vector<32x96xbf16>, vector<16x96xf32> -> vector<16x96xf32>
    %7 = arith.addf %3, %6 : vector<16x96xf32>
    %c0_6 = arith.constant 0 : index
    %c0_7 = arith.constant 0 : index
    %8 = vector.load %arg7[%c0_6, %c0_7] : memref<16x96xf32, #tpu.memory_space<vmem>>, vector<16x96xf32>
    tpu.vector_store %arg7[%c0_6, %c0_7], %7 {strides = array<i32>} : memref<16x96xf32, #tpu.memory_space<vmem>>, vector<16x96xf32>,
    %c0_i32_8 = arith.constant 0 : i32
    %9 = arith.cmpi eq, %arg2, %c0_i32_8 : i32
    %10 = arith.extui %9 : i1 to i32
    %c0_i32_9 = arith.constant 0 : i32
    %11 = arith.cmpi ne, %10, %c0_i32_9 : i32
    scf.if %11 {
      %c0_10 = arith.constant 0 : index
      %c0_11 = arith.constant 0 : index
      %12 = vector.load %arg7[%c0_10, %c0_11] : memref<16x96xf32, #tpu.memory_space<vmem>>, vector<16x96xf32>
      %c0_12 = arith.constant 0 : index
      %c0_13 = arith.constant 0 : index
      %13 = vector.load %arg5[%c0_12, %c0_13] : memref<1x96xf32, #tpu.memory_space<vmem>>, vector<1x96xf32>
      %14 = vector.broadcast %13 : vector<1x96xf32> to vector<16x96xf32>
      %15 = arith.addf %12, %14 : vector<16x96xf32>
      %16 = arith.truncf %15 : vector<16x96xf32> to vector<16x96xbf16>
      %c0_14 = arith.constant 0 : index
      %c0_15 = arith.constant 0 : index
      %17 = vector.load %arg6[%c0_14, %c0_15] : memref<16x96xbf16, #tpu.memory_space<vmem>>, vector<16x96xbf16>
      tpu.vector_store %arg6[%c0_14, %c0_15], %16 {strides = array<i32>} : memref<16x96xbf16, #tpu.memory_space<vmem>>, vector<16x96xbf16>,
    } else {
    }
    return
  }
  func.func @transform_0(%arg0: i32, %arg1: i32, %arg2: i32) -> (i32, i32) {
    %c0_i32 = arith.constant 0 : i32
    return %arg0, %arg2 : i32, i32
  }
  func.func @transform_1(%arg0: i32, %arg1: i32, %arg2: i32) -> (i32, i32) {
    %c0_i32 = arith.constant 0 : i32
    return %arg2, %arg1 : i32, i32
  }
  func.func @transform_2(%arg0: i32, %arg1: i32, %arg2: i32) -> (i32, i32) {
    %c0_i32 = arith.constant 0 : i32
    %c0_i32_0 = arith.constant 0 : i32
    return %c0_i32, %arg1 : i32, i32
  }
  func.func @transform_3(%arg0: i32, %arg1: i32, %arg2: i32) -> (i32, i32) {
    %c0_i32 = arith.constant 0 : i32
    return %arg0, %arg1 : i32, i32
  }
}

</mosaic_0001>

<llo_original>
// kernel: tpu_custom_call.1
$region0: #{tpu_custom_call.1}
  #allocation0 [shape = 'u32[]', space=smem, size = 0x4, offset = 0x4, fixed_abs, tag = 'smem constant byte address 0x4 - core index']
  #allocation1 [shape = 'u32[144,128]{1,0:T(1,128)}', space=vmem, size = 0x12000, scoped, tag = 'internal scratch']
  #allocation2 [shape = 'f32[16,96]{1,0:T(8,128)}', space=vmem, size = 0x2000, scoped, tag = 'scratch operand']
  %s0 = inlined_call_operand.hbm [shape: bf16[16,32], index: 0, kind: input, shape index: {}]
  %s1 = inlined_call_operand.hbm [shape: bf16[32,96], index: 1, kind: input, shape index: {}]
  %s2 = inlined_call_operand.vmem [shape: f32[1,96], index: 2, kind: input, shape index: {}]
  %s3 = inlined_call_operand.hbm [shape: bf16[16,96], index: 3, kind: output, shape index: {}]
  %s4 = sld [smem:[#allocation0]]
  $region38: #{tpu_custom_call.1} parent=0
    _
  %s6 = ssub.s32 1, %s4
  %s7 = scalar_select 0, %s6, %s4
  $region1: #{tpu_custom_call.1} parent=0
    #allocation3 [shape = 'u8[4096]{0}', space=vmem, size = 0x1000, scoped, tag = 'input window, operand 0, single buffered']
    #allocation4 [shape = 's32[1]{0}', space=sflag, size = 0x4, scoped, tag = 'scoped memory for tpu_custom_call.1']
    #allocation5 [shape = 's32[1]{0}', space=sflag, size = 0x4, scoped, tag = 'scoped memory for tpu_custom_call.1']
    #allocation6 [shape = 'u8[8192]{0}', space=vmem, size = 0x2000, scoped, tag = 'input window, operand 1, single buffered']
    #allocation7 [shape = 's32[1]{0}', space=sflag, size = 0x4, scoped, tag = 'scoped memory for tpu_custom_call.1']
    #allocation8 [shape = 'u8[4096]{0}', space=vmem, size = 0x1000, scoped, tag = 'output window, operand 0, single buffered']
    %8 = vsyncpa [#allocation4], 0
    %9 = vsyncpa [#allocation7], 0
    %10 = vsyncpa [#allocation5], 0
    // Predicated region
    $region2: #{tpu_custom_call.1} parent=1 // pred_check
      _
    $region3: #{tpu_custom_call.1} parent=1 // pred_check_branch
      %12 = sbr.rel (0) target = $region5
    $region4: #{tpu_custom_call.1} parent=1 // pred_region
      %s14 = ssub.s32 128, 128
      %15 = vsyncadd [#allocation4], %s14
      %s16 = sshll.u32 [#allocation3], 4
      %s17 = int_to_ptr.vmem [resolvable:$true] %s16
      %22 = dma.hbm_to_vmem [thread:$0]  %s0, 128, %s17, [#allocation4], 64, 64, 4
    $region5: #{tpu_custom_call.1} parent=1 // pred_fallthru
      _
    // Predicated region
    $region6: #{tpu_custom_call.1} parent=1 // pred_check
      _
    $region7: #{tpu_custom_call.1} parent=1 // pred_check_branch
      %24 = sbr.rel (0) target = $region9
    $region8: #{tpu_custom_call.1} parent=1 // pred_region
      %s26 = ssub.s32 256, 256
      %27 = vsyncadd [#allocation7], %s26
      %s28 = sshll.u32 [#allocation6], 4
      %s29 = int_to_ptr.vmem [resolvable:$true] %s28
      %34 = dma.hbm_to_vmem [thread:$0]  %s1, 256, %s29, [#allocation7], 64, 64, 4
    $region9: #{tpu_custom_call.1} parent=1 // pred_fallthru
      _
    // Predicated region
    $region10: #{tpu_custom_call.1} parent=1 // pred_check
      _
    $region11: #{tpu_custom_call.1} parent=1 // pred_check_branch
      %36 = sbr.rel (0) target = $region13
    $region12: #{tpu_custom_call.1} parent=1 // pred_region
      _
    $region13: #{tpu_custom_call.1} parent=1 // pred_fallthru
      _
    // Predicated region
    $region14: #{tpu_custom_call.1} parent=1 // pred_check
      _
    $region15: #{tpu_custom_call.1} parent=1 // pred_check_branch
      %38 = sbr.rel (0) target = $region17
    $region16: #{tpu_custom_call.1} parent=1 // pred_region
      %39 = dma.done [#allocation4], 128
    $region17: #{tpu_custom_call.1} parent=1 // pred_fallthru
      _
    // Predicated region
    $region18: #{tpu_custom_call.1} parent=1 // pred_check
      _
    $region19: #{tpu_custom_call.1} parent=1 // pred_check_branch
      %41 = sbr.rel (0) target = $region21
    $region20: #{tpu_custom_call.1} parent=1 // pred_region
      %42 = dma.done [#allocation7], 256
    $region21: #{tpu_custom_call.1} parent=1 // pred_fallthru
      _
    %p44 = scmp.eq.s32.totalorder 0, 0
    // Predicated region
    $region22: #{tpu_custom_call.1} parent=1 // pred_check
      %p45 = pneg %p44
    $region23: #{tpu_custom_call.1} parent=1 // pred_check_branch
      %47 = sbr.rel (%p45) target = $region25
    $region24: #{tpu_custom_call.1} parent=1 // pred_region
      %vm48 = vcmask 785408
      %49 = vst.msk [vmem:[#allocation2] sm:$0xff] %vm48, 0.0
      %50 = vst.msk [vmem:[#allocation2 + $0x8] sm:$0xff] %vm48, 0.0
    $region25: #{tpu_custom_call.1} parent=1 // pred_fallthru
      _
    %v51 = vld [vmem:[#allocation2] sm:$0xff]
    %v52 = vld [vmem:[#allocation2 + $0x8] sm:$0xff]
    %v53 = vld [vmem:[#allocation3] sm:$0xf]
    %v54 = vld [vmem:[#allocation3 + $0x4] sm:$0xf]
    %v55 = vld [vmem:[#allocation6] sm:$0xf]
    %v56 = vld [vmem:[#allocation6 + $0x4] sm:$0xf]
    %v57 = vld [vmem:[#allocation6 + $0x8] sm:$0xf]
    %v58 = vld [vmem:[#allocation6 + $0xc] sm:$0xf]
    %v61 = vunpack.c.l.b16 %v53
    %v62 = vunpack.c.l.b16 %v54
    %v63 = vpack.c.b16 %v62, %v61
    %v68 = vunpack.c.l.b16 %v55
    %v69 = vunpack.c.l.b16 %v56
    %v70 = vunpack.c.l.b16 %v57
    %v71 = vunpack.c.l.b16 %v58
    %v72 = vpack.c.b16 %v69, %v68
    %v73 = vpack.c.b16 %v71, %v70
    %vm76 = vcmask 261120
    %v78 = vsel %vm76, %v63, 0
    %80 = vmatprep.subr.bf16.mxu0 0
    %81 = vmatpush1.bf16.msra.mxu0 0
    %82 = vmatprep.subr.bf16.mxu0 0
    %83 = vmatpush1.bf16.msra.mxu0 0
    %84 = vmatprep.subr.bf16.mxu0 0
    %85 = vmatpush1.bf16.msra.mxu0 0
    %86 = vmatprep.subr.bf16.mxu0 0
    %87 = vmatpush1.bf16.msra.mxu0 0
    %88 = vmatprep.subr.bf16.mxu0 0
    %89 = vmatpush1.bf16.msra.mxu0 0
    %90 = vmatprep.subr.bf16.mxu0 0
    %91 = vmatpush1.bf16.msra.mxu0 0
    %92 = vmatprep.subr.bf16.mxu0 0
    %93 = vmatpush1.bf16.msra.mxu0 %v73
    %94 = vmatprep.subr.bf16.mxu0 0
    %95 = vmatpush1.bf16.msra.mxu0 %v72
    %96 = vmatprep.subr.bf16.mxu0 0
    %97 = vmatpush2.bf16.msra.mxu0 0
    %98 = vmatprep.subr.bf16.mxu0 0
    %99 = vmatpush2.bf16.msra.mxu0 0
    %100 = vmatprep.subr.bf16.mxu0 0
    %101 = vmatpush2.bf16.msra.mxu0 0
    %102 = vmatprep.subr.bf16.mxu0 0
    %103 = vmatpush2.bf16.msra.mxu0 0
    %104 = vmatprep.subr.bf16.mxu0 0
    %105 = vmatpush2.bf16.msra.mxu0 0
    %106 = vmatprep.subr.bf16.mxu0 0
    %107 = vmatpush2.bf16.msra.mxu0 0
    %108 = vmatprep.subr.bf16.mxu0 0
    %109 = vmatpush2.bf16.msra.mxu0 0
    %110 = vmatprep.subr.bf16.mxu0 0
    %111 = vmatpush2.bf16.msra.mxu0 0
    %112 = vmatprep.mubr.bf16.mxu0 0
    %113 = vmatmul.mubr.bf16.gmra.mxu0 %v78
    %v114 = vpop.f32.mrf.mxu0
    %v115 = vadd.f32 0.0, %v114
    %v116 = vpop.f32.mrf.mxu0
    %v117 = vpop.f32.mrf.mxu0
    %v118 = vadd.f32 0.0, %v117
    %v119 = vpop.f32.mrf.mxu0
    %120 = vdwg.mxu0
    %v121 = vadd.f32 %v51, %v115
    %v122 = vadd.f32 %v52, %v118
    %vm123 = vcmask 785408
    %124 = vst.msk [vmem:[#allocation2] sm:$0xff] %vm123, %v121
    %125 = vst.msk [vmem:[#allocation2 + $0x8] sm:$0xff] %vm123, %v122
    // Predicated region
    $region26: #{tpu_custom_call.1} parent=1 // pred_check
      %p126 = pneg %p44
    $region27: #{tpu_custom_call.1} parent=1 // pred_check_branch
      %128 = sbr.rel (%p126) target = $region29
    $region28: #{tpu_custom_call.1} parent=1 // pred_region
      %v129 = vld [vmem:[#allocation2] sm:$0xff]
      %v130 = vld [vmem:[#allocation2 + $0x8] sm:$0xff]
      %v131 = vld [vmem:[%s2] sm:$0x1]
      %v133 = vlaneseq
      %v134 = vshrl.u32 %v133, 7
      %v135 = vsub.s32 0, %v134
      %v136 = vrot.slane %v131, %v135
      %v138 = vadd.f32 %v129, %v136
      %v139 = vadd.f32 %v130, %v136
      %v140 = vpack.c.bf16 %v139, %v138
      %v142 = vunpack.c.l.b16 %v140
      %v143 = vunpack.c.h.b16 %v140
      %v144 = vpack.c.b16 %v142, %v142
      %v145 = vpack.c.b16 %v143, %v143
      %vm148 = vcmask 781312
      %149 = vst.msk [vmem:[#allocation8] sm:$0xf] %vm148, %v144
      %150 = vst.msk [vmem:[#allocation8 + $0x4] sm:$0xf] %vm148, %v145
    $region29: #{tpu_custom_call.1} parent=1 // pred_fallthru
      _
    // Predicated region
    $region30: #{tpu_custom_call.1} parent=1 // pred_check
      _
    $region31: #{tpu_custom_call.1} parent=1 // pred_check_branch
      %152 = sbr.rel (0) target = $region33
    $region32: #{tpu_custom_call.1} parent=1 // pred_region
      %s154 = ssub.s32 128, 128
      %155 = vsyncadd [#allocation5], %s154
      %s156 = sshll.u32 [#allocation8], 4
      %s157 = int_to_ptr.vmem [resolvable:$true] %s156
      %162 = dma.vmem_to_hbm [thread:$0]  %s157, 128, %s3, [#allocation5], 64, 64, 4
    $region33: #{tpu_custom_call.1} parent=1 // pred_fallthru
      _
    // Predicated region
    $region34: #{tpu_custom_call.1} parent=1 // pred_check
      _
    $region35: #{tpu_custom_call.1} parent=1 // pred_check_branch
      %164 = sbr.rel (0) target = $region37
    $region36: #{tpu_custom_call.1} parent=1 // pred_region
      %165 = dma.done [#allocation5], 128
    $region37: #{tpu_custom_call.1} parent=1 // pred_fallthru
      _
    %166 = vsyncpa [#allocation4], 1
    %167 = vsyncpa [#allocation7], 1
    %168 = vsyncpa [#allocation5], 1

</llo_original>
